<compile_context>
chip_gen: v7x
topology: tpu7x:2x2x1
jax: 0.10.0
libtpu: 0.0.40
codegen_flags: <defaults>
</compile_context>

<pallas_src>
import jax
import jax.numpy as jnp
from jax.experimental import pallas as pl
from jax.experimental.pallas import tpu as pltpu  # noqa: F401  (TPU backend)

# ----------------------------------------------------------------------------
# Problem sizes (KarateClub: 34 nodes, 34 one-hot features, 4 classes)
# ----------------------------------------------------------------------------
NUM_NODES = 34
NUM_FEATURES = 34
NUM_CLASSES = 4
HID1 = 4   # conv1: 34 -> 4
HID2 = 4   # conv2: 4 -> 4
HID3 = 2   # conv3: 4 -> 2

# TPU-friendly padded sizes: sublane multiple of 8, lane multiple of 128.
N_PAD = 64
F_PAD = 128
H_PAD = 128


# ----------------------------------------------------------------------------
# Pallas kernel: whole GCN forward on padded dense tensors (one invocation).
#   a_ref : (N_PAD, N_PAD)      bf16   normalized adjacency
#   x_ref : (N_PAD, F_PAD)      bf16   node features
#   w_ref : (4, F_PAD, H_PAD)   bf16   packed weights [W1, W2, W3, Wc]
#   b_ref : (8, H_PAD)          f32    packed biases  [b1, b2, b3, bc, 0...]
#   o_ref : (2, N_PAD, H_PAD)   f32    [0] = logits (lanes 0:4), [1] = h3 (lanes 0:2)
# ----------------------------------------------------------------------------
def gcn_kernel(a_ref, x_ref, w_ref, b_ref, o_ref):
    f32 = jnp.float32
    bf16 = jnp.bfloat16

    a = a_ref[...]                 # (N_PAD, N_PAD)
    x = x_ref[...]                 # (N_PAD, F_PAD)

    # Static slab slices are free (no runtime cost).
    w1 = w_ref[0]
    w2 = w_ref[1]
    w3 = w_ref[2]
    wc = w_ref[3]
    b1 = b_ref[0:1, :]
    b2 = b_ref[1:2, :]
    b3 = b_ref[2:3, :]
    bc = b_ref[3:4, :]

    # conv1 + tanh   (bf16 MXU inputs, f32 accumulation; bias/tanh in f32)
    xw1 = jnp.dot(x, w1, preferred_element_type=f32)
    h1 = jnp.tanh(jnp.dot(a, xw1.astype(bf16), preferred_element_type=f32) + b1)

    # conv2 + tanh
    xw2 = jnp.dot(h1.astype(bf16), w2, preferred_element_type=f32)
    h2 = jnp.tanh(jnp.dot(a, xw2.astype(bf16), preferred_element_type=f32) + b2)

    # conv3 + tanh
    xw3 = jnp.dot(h2.astype(bf16), w3, preferred_element_type=f32)
    h3 = jnp.tanh(jnp.dot(a, xw3.astype(bf16), preferred_element_type=f32) + b3)

    # classifier (Linear)
    logits = jnp.dot(h3.astype(bf16), wc, preferred_element_type=f32) + bc

    # Single packed, lane-dense output (one DMA descriptor).
    o_ref[0, :, :] = logits
    o_ref[1, :, :] = h3


# ----------------------------------------------------------------------------
# One-time parameter packing (hoisted out of the per-call path).
# ----------------------------------------------------------------------------
def prepare_params(params):
    """Pad + pack weights into a bf16 (4, 128, 128) slab and biases into an
    f32 (8, 128) slab.  Call ONCE at init, not per forward."""
    w1, b1, w2, b2, w3, b3, wc, bc = params

    def padw(w):
        r, c = w.shape
        return jnp.zeros((F_PAD, H_PAD), jnp.bfloat16).at[:r, :c].set(
            w.astype(jnp.bfloat16))

    w_slab = jnp.stack([padw(w1), padw(w2), padw(w3), padw(wc)], axis=0)

    def padb(b):
        return jnp.zeros((H_PAD,), jnp.float32).at[: b.shape[0]].set(b)

    b_slab = jnp.zeros((8, H_PAD), jnp.float32)
    b_slab = (b_slab.at[0].set(padb(b1))
                     .at[1].set(padb(b2))
                     .at[2].set(padb(b3))
                     .at[3].set(padb(bc)))
    return w_slab, b_slab


# ----------------------------------------------------------------------------
# Forward wrapper: only per-call work is padding/casting A_hat and X plus the
# single pallas_call and two output slices.
# ----------------------------------------------------------------------------
@jax.jit
def gcn_forward(x, a_hat, w_slab, b_slab):
    n, f = x.shape
    a_p = jnp.zeros((N_PAD, N_PAD), jnp.bfloat16).at[:n, :n].set(
        a_hat.astype(jnp.bfloat16))
    x_p = jnp.zeros((N_PAD, F_PAD), jnp.bfloat16).at[:n, :f].set(
        x.astype(jnp.bfloat16))

    # No grid, no per-tensor BlockSpecs: whole arrays land in VMEM, one DMA each.
    fused = pl.pallas_call(
        gcn_kernel,
        out_shape=jax.ShapeDtypeStruct((2, N_PAD, H_PAD), jnp.float32),
    )(a_p, x_p, w_slab, b_slab)

    out = fused[0, :NUM_NODES, :NUM_CLASSES]
    h = fused[1, :NUM_NODES, :HID3]
    return out, h


# ----------------------------------------------------------------------------
# Plain-JAX glue: normalized adjacency + deterministic parameter init.
# ----------------------------------------------------------------------------
def build_norm_adj(edge_index, num_nodes):
    src, dst = edge_index[0], edge_index[1]
    a = jnp.zeros((num_nodes, num_nodes), jnp.float32)
    a = a.at[src, dst].set(1.0)
    a = a.at[dst, src].set(1.0)                     # undirected
    a = a + jnp.eye(num_nodes, dtype=jnp.float32)   # self-loops (GCNConv default)
    a = jnp.minimum(a, 1.0)
    deg = jnp.sum(a, axis=1)
    d_inv_sqrt = 1.0 / jnp.sqrt(deg)
    return a * d_inv_sqrt[:, None] * d_inv_sqrt[None, :]


def init_params(key):
    ks = jax.random.split(key, 8)

    def glorot(k, fan_in, fan_out):
        lim = jnp.sqrt(6.0 / (fan_in + fan_out))
        return jax.random.uniform(k, (fan_in, fan_out), jnp.float32, -lim, lim)

    w1 = glorot(ks[0], NUM_FEATURES, HID1)      # GCNConv(34, 4)
    b1 = jnp.zeros((HID1,), jnp.float32)
    w2 = glorot(ks[1], HID1, HID2)              # GCNConv(4, 4)
    b2 = jnp.zeros((HID2,), jnp.float32)
    w3 = glorot(ks[2], HID2, HID3)              # GCNConv(4, 2)
    b3 = jnp.zeros((HID3,), jnp.float32)
    wc = glorot(ks[3], HID3, NUM_CLASSES)       # Linear(2, 4) stored as (in, out)
    bc = jax.random.uniform(ks[4], (NUM_CLASSES,), jnp.float32,
                            -1.0 / jnp.sqrt(HID3), 1.0 / jnp.sqrt(HID3))
    return (w1, b1, w2, b2, w3, b3, wc, bc)


def reference_forward(x, a_hat, params):
    w1, b1, w2, b2, w3, b3, wc, bc = params
    h = jnp.tanh(a_hat @ (x @ w1) + b1)
    h = jnp.tanh(a_hat @ (h @ w2) + b2)
    h = jnp.tanh(a_hat @ (h @ w3) + b3)
    out = h @ wc + bc
    return out, h


if __name__ == "__main__":
    key = jax.random.PRNGKey(0)
    k_edges, k_params = jax.random.split(key)

    # Node features: identity one-hot (exactly like KarateClub's x).
    x = jnp.eye(NUM_NODES, NUM_FEATURES, dtype=jnp.float32)

    # Deterministic synthetic undirected edge list (~78 edges like Karate Club).
    num_edges = 78
    pairs = jax.random.randint(k_edges, (2, num_edges), 0, NUM_NODES)
    dst = jnp.where(pairs[1] == pairs[0], (pairs[1] + 1) % NUM_NODES, pairs[1])
    edge_index = jnp.stack([pairs[0], dst], axis=0)

    a_hat = build_norm_adj(edge_index, NUM_NODES)
    params = init_params(k_params)
    w_slab, b_slab = prepare_params(params)   # one-time pad/pack (not per call)

    out, h = gcn_forward(x, a_hat, w_slab, b_slab)
    out = jax.block_until_ready(out)
    h = jax.block_until_ready(h)

    # Sanity check against plain-JAX f32 reference.
    out_ref, h_ref = reference_forward(x, a_hat, params)
    assert out.shape == (NUM_NODES, NUM_CLASSES) and h.shape == (NUM_NODES, HID3)
    # bf16 MXU inputs with f32 accumulation -> relaxed tolerance vs f32 reference.
    assert jnp.allclose(out, out_ref, atol=3e-2), "logits mismatch"
    assert jnp.allclose(h, h_ref, atol=3e-2), "embedding mismatch"

    print("KERNEL_OK")
</pallas_src>

<mosaic_0001>
module attributes {stable_mosaic.version = 11 : i64} {
  func.func @gcn_kernel(%arg0: memref<64x64xbf16, #tpu.memory_space<vmem>>, %arg1: memref<64x128xbf16, #tpu.memory_space<vmem>>, %arg2: memref<4x128x128xbf16, #tpu.memory_space<vmem>>, %arg3: memref<8x128xf32, #tpu.memory_space<vmem>>, %arg4: memref<2x64x128xf32, #tpu.memory_space<vmem>>) attributes {dimension_semantics = [], scalar_prefetch = 0 : i64, scratch_operands = 0 : i64, tpu.core_type = #tpu.core_type<tc>} {
    %c0 = arith.constant 0 : index
    %c0_0 = arith.constant 0 : index
    %0 = vector.load %arg0[%c0, %c0_0] : memref<64x64xbf16, #tpu.memory_space<vmem>>, vector<64x64xbf16>
    %c0_1 = arith.constant 0 : index
    %c0_2 = arith.constant 0 : index
    %1 = vector.load %arg1[%c0_1, %c0_2] : memref<64x128xbf16, #tpu.memory_space<vmem>>, vector<64x128xbf16>
    %c0_3 = arith.constant 0 : index
    %c0_4 = arith.constant 0 : index
    %c0_5 = arith.constant 0 : index
    %2 = vector.load %arg2[%c0_3, %c0_4, %c0_5] : memref<4x128x128xbf16, #tpu.memory_space<vmem>>, vector<1x128x128xbf16>
    %3 = vector.shape_cast %2 : vector<1x128x128xbf16> to vector<128x128xbf16>
    %c1 = arith.constant 1 : index
    %c0_6 = arith.constant 0 : index
    %c0_7 = arith.constant 0 : index
    %4 = vector.load %arg2[%c1, %c0_6, %c0_7] : memref<4x128x128xbf16, #tpu.memory_space<vmem>>, vector<1x128x128xbf16>
    %5 = vector.shape_cast %4 : vector<1x128x128xbf16> to vector<128x128xbf16>
    %c2 = arith.constant 2 : index
    %c0_8 = arith.constant 0 : index
    %c0_9 = arith.constant 0 : index
    %6 = vector.load %arg2[%c2, %c0_8, %c0_9] : memref<4x128x128xbf16, #tpu.memory_space<vmem>>, vector<1x128x128xbf16>
    %7 = vector.shape_cast %6 : vector<1x128x128xbf16> to vector<128x128xbf16>
    %c3 = arith.constant 3 : index
    %c0_10 = arith.constant 0 : index
    %c0_11 = arith.constant 0 : index
    %8 = vector.load %arg2[%c3, %c0_10, %c0_11] : memref<4x128x128xbf16, #tpu.memory_space<vmem>>, vector<1x128x128xbf16>
    %9 = vector.shape_cast %8 : vector<1x128x128xbf16> to vector<128x128xbf16>
    %c0_12 = arith.constant 0 : index
    %c0_13 = arith.constant 0 : index
    %10 = vector.load %arg3[%c0_12, %c0_13] : memref<8x128xf32, #tpu.memory_space<vmem>>, vector<1x128xf32>
    %c1_14 = arith.constant 1 : index
    %c0_15 = arith.constant 0 : index
    %11 = vector.load %arg3[%c1_14, %c0_15] : memref<8x128xf32, #tpu.memory_space<vmem>>, vector<1x128xf32>
    %c2_16 = arith.constant 2 : index
    %c0_17 = arith.constant 0 : index
    %12 = vector.load %arg3[%c2_16, %c0_17] : memref<8x128xf32, #tpu.memory_space<vmem>>, vector<1x128xf32>
    %c3_18 = arith.constant 3 : index
    %c0_19 = arith.constant 0 : index
    %13 = vector.load %arg3[%c3_18, %c0_19] : memref<8x128xf32, #tpu.memory_space<vmem>>, vector<1x128xf32>
    %cst = arith.constant dense<0.000000e+00> : vector<64x128xf32>
    %14 = tpu.matmul %1, %3, %cst {dimension_numbers = #tpu.dot_dimension_numbers<[1], [0], [0], [1], [0, 0, 1, 1], [], []>} : vector<64x128xbf16>, vector<128x128xbf16>, vector<64x128xf32> -> vector<64x128xf32>
    %15 = arith.truncf %14 : vector<64x128xf32> to vector<64x128xbf16>
    %cst_20 = arith.constant dense<0.000000e+00> : vector<64x128xf32>
    %16 = tpu.matmul %0, %15, %cst_20 {dimension_numbers = #tpu.dot_dimension_numbers<[1], [0], [0], [1], [0, 0, 1, 1], [], []>} : vector<64x64xbf16>, vector<64x128xbf16>, vector<64x128xf32> -> vector<64x128xf32>
    %17 = vector.broadcast %10 : vector<1x128xf32> to vector<64x128xf32>
    %18 = arith.addf %16, %17 : vector<64x128xf32>
    %19 = math.tanh %18 : vector<64x128xf32>
    %20 = arith.truncf %19 : vector<64x128xf32> to vector<64x128xbf16>
    %cst_21 = arith.constant dense<0.000000e+00> : vector<64x128xf32>
    %21 = tpu.matmul %20, %5, %cst_21 {dimension_numbers = #tpu.dot_dimension_numbers<[1], [0], [0], [1], [0, 0, 1, 1], [], []>} : vector<64x128xbf16>, vector<128x128xbf16>, vector<64x128xf32> -> vector<64x128xf32>
    %22 = arith.truncf %21 : vector<64x128xf32> to vector<64x128xbf16>
    %cst_22 = arith.constant dense<0.000000e+00> : vector<64x128xf32>
    %23 = tpu.matmul %0, %22, %cst_22 {dimension_numbers = #tpu.dot_dimension_numbers<[1], [0], [0], [1], [0, 0, 1, 1], [], []>} : vector<64x64xbf16>, vector<64x128xbf16>, vector<64x128xf32> -> vector<64x128xf32>
    %24 = vector.broadcast %11 : vector<1x128xf32> to vector<64x128xf32>
    %25 = arith.addf %23, %24 : vector<64x128xf32>
    %26 = math.tanh %25 : vector<64x128xf32>
    %27 = arith.truncf %26 : vector<64x128xf32> to vector<64x128xbf16>
    %cst_23 = arith.constant dense<0.000000e+00> : vector<64x128xf32>
    %28 = tpu.matmul %27, %7, %cst_23 {dimension_numbers = #tpu.dot_dimension_numbers<[1], [0], [0], [1], [0, 0, 1, 1], [], []>} : vector<64x128xbf16>, vector<128x128xbf16>, vector<64x128xf32> -> vector<64x128xf32>
    %29 = arith.truncf %28 : vector<64x128xf32> to vector<64x128xbf16>
    %cst_24 = arith.constant dense<0.000000e+00> : vector<64x128xf32>
    %30 = tpu.matmul %0, %29, %cst_24 {dimension_numbers = #tpu.dot_dimension_numbers<[1], [0], [0], [1], [0, 0, 1, 1], [], []>} : vector<64x64xbf16>, vector<64x128xbf16>, vector<64x128xf32> -> vector<64x128xf32>
    %31 = vector.broadcast %12 : vector<1x128xf32> to vector<64x128xf32>
    %32 = arith.addf %30, %31 : vector<64x128xf32>
    %33 = math.tanh %32 : vector<64x128xf32>
    %34 = arith.truncf %33 : vector<64x128xf32> to vector<64x128xbf16>
    %cst_25 = arith.constant dense<0.000000e+00> : vector<64x128xf32>
    %35 = tpu.matmul %34, %9, %cst_25 {dimension_numbers = #tpu.dot_dimension_numbers<[1], [0], [0], [1], [0, 0, 1, 1], [], []>} : vector<64x128xbf16>, vector<128x128xbf16>, vector<64x128xf32> -> vector<64x128xf32>
    %36 = vector.broadcast %13 : vector<1x128xf32> to vector<64x128xf32>
    %37 = arith.addf %35, %36 : vector<64x128xf32>
    %c0_26 = arith.constant 0 : index
    %c0_27 = arith.constant 0 : index
    %c0_28 = arith.constant 0 : index
    %38 = vector.load %arg4[%c0_26, %c0_27, %c0_28] : memref<2x64x128xf32, #tpu.memory_space<vmem>>, vector<1x64x128xf32>
    %39 = vector.shape_cast %38 : vector<1x64x128xf32> to vector<64x128xf32>
    %40 = vector.shape_cast %37 : vector<64x128xf32> to vector<1x64x128xf32>
    tpu.vector_store %arg4[%c0_26, %c0_27, %c0_28], %40 {strides = array<i32>} : memref<2x64x128xf32, #tpu.memory_space<vmem>>, vector<1x64x128xf32>,
    %c1_29 = arith.constant 1 : index
    %c0_30 = arith.constant 0 : index
    %c0_31 = arith.constant 0 : index
    %41 = vector.load %arg4[%c1_29, %c0_30, %c0_31] : memref<2x64x128xf32, #tpu.memory_space<vmem>>, vector<1x64x128xf32>
    %42 = vector.shape_cast %41 : vector<1x64x128xf32> to vector<64x128xf32>
    %43 = vector.shape_cast %33 : vector<64x128xf32> to vector<1x64x128xf32>
    tpu.vector_store %arg4[%c1_29, %c0_30, %c0_31], %43 {strides = array<i32>} : memref<2x64x128xf32, #tpu.memory_space<vmem>>, vector<1x64x128xf32>,
    return
  }
}

</mosaic_0001>

<llo_original>
// kernel: gcn_forward.1
$region0: #{gcn_forward.1}
  #allocation0 [shape = 'u32[]', space=smem, size = 0x4, offset = 0x4, fixed_abs, tag = 'smem constant byte address 0x4 - core index']
  #allocation1 [shape = 'u32[144,128]{1,0:T(1,128)}', space=vmem, size = 0x12000, scoped, tag = 'internal scratch']
  %s0 = inlined_call_operand.vmem [shape: bf16[64,64], index: 0, kind: input, shape index: {}]
  %s1 = inlined_call_operand.vmem [shape: bf16[64,128], index: 1, kind: input, shape index: {}]
  %s2 = inlined_call_operand.hbm [shape: bf16[4,128,128], index: 2, kind: input, shape index: {}]
  %s3 = inlined_call_operand.vmem [shape: f32[8,128], index: 3, kind: input, shape index: {}]
  %s4 = inlined_call_operand.vmem [shape: f32[2,64,128], index: 4, kind: output, shape index: {}]
  %s5 = sld [smem:[#allocation0]]
  $region30: #{gcn_forward.1} parent=0
    _
  %s7 = ssub.s32 1, %s5
  %s8 = scalar_select 0, %s7, %s5
  $region1: #{gcn_forward.1} parent=0
    #allocation2 [shape = 'u8[131072]{0}', space=vmem, size = 0x20000, scoped, tag = 'input window, operand 2, single buffered']
    #allocation3 [shape = 's32[1]{0}', space=sflag, size = 0x4, scoped, tag = 'scoped memory for gcn_forward.1']
    %9 = vsyncpa [#allocation3], 0
    // Predicated region
    $region2: #{gcn_forward.1} parent=1 // pred_check
      _
    $region3: #{gcn_forward.1} parent=1 // pred_check_branch
      %11 = sbr.rel (0) target = $region5
    $region4: #{gcn_forward.1} parent=1 // pred_region
      _
    $region5: #{gcn_forward.1} parent=1 // pred_fallthru
      _
    // Predicated region
    $region6: #{gcn_forward.1} parent=1 // pred_check
      _
    $region7: #{gcn_forward.1} parent=1 // pred_check_branch
      %13 = sbr.rel (0) target = $region9
    $region8: #{gcn_forward.1} parent=1 // pred_region
      _
    $region9: #{gcn_forward.1} parent=1 // pred_fallthru
      _
    // Predicated region
    $region10: #{gcn_forward.1} parent=1 // pred_check
      _
    $region11: #{gcn_forward.1} parent=1 // pred_check_branch
      %15 = sbr.rel (0) target = $region13
    $region12: #{gcn_forward.1} parent=1 // pred_region
      %s17 = ssub.s32 4096, 4096
      %18 = vsyncadd [#allocation3], %s17
      %s19 = sshll.u32 [#allocation2], 4
      %s20 = int_to_ptr.vmem [resolvable:$true] %s19
      %25 = dma.hbm_to_vmem [thread:$0]  %s2, 4096, %s20, [#allocation3], 64, 64, 4
    $region13: #{gcn_forward.1} parent=1 // pred_fallthru
      _
    // Predicated region
    $region14: #{gcn_forward.1} parent=1 // pred_check
      _
    $region15: #{gcn_forward.1} parent=1 // pred_check_branch
      %27 = sbr.rel (0) target = $region17
    $region16: #{gcn_forward.1} parent=1 // pred_region
      _
    $region17: #{gcn_forward.1} parent=1 // pred_fallthru
      _
    // Predicated region
    $region18: #{gcn_forward.1} parent=1 // pred_check
      _
    $region19: #{gcn_forward.1} parent=1 // pred_check_branch
      %29 = sbr.rel (0) target = $region21
    $region20: #{gcn_forward.1} parent=1 // pred_region
      %30 = dma.done [#allocation3], 4096
    $region21: #{gcn_forward.1} parent=1 // pred_fallthru
      _
    %v32 = vld [vmem:[%s0] sm:$0xf]
    %v33 = vld [vmem:[%s0 + $0x4] sm:$0xf]
    %v34 = vld [vmem:[%s0 + $0x8] sm:$0xf]
    %v35 = vld [vmem:[%s0 + $0xc] sm:$0xf]
    %v36 = vld [vmem:[%s0 + $0x10] sm:$0xf]
    %v37 = vld [vmem:[%s0 + $0x14] sm:$0xf]
    %v38 = vld [vmem:[%s0 + $0x18] sm:$0xf]
    %v39 = vld [vmem:[%s0 + $0x1c] sm:$0xf]
    %v40 = vld [vmem:[%s1] sm:$0xf]
    %v41 = vld [vmem:[%s1 + $0x4] sm:$0xf]
    %v42 = vld [vmem:[%s1 + $0x8] sm:$0xf]
    %v43 = vld [vmem:[%s1 + $0xc] sm:$0xf]
    %v44 = vld [vmem:[%s1 + $0x10] sm:$0xf]
    %v45 = vld [vmem:[%s1 + $0x14] sm:$0xf]
    %v46 = vld [vmem:[%s1 + $0x18] sm:$0xf]
    %v47 = vld [vmem:[%s1 + $0x1c] sm:$0xf]
    %v48 = vld [vmem:[#allocation2] sm:$0xf]
    %v49 = vld [vmem:[#allocation2 + $0x4] sm:$0xf]
    %v50 = vld [vmem:[#allocation2 + $0x8] sm:$0xf]
    %v51 = vld [vmem:[#allocation2 + $0xc] sm:$0xf]
    %v52 = vld [vmem:[#allocation2 + $0x10] sm:$0xf]
    %v53 = vld [vmem:[#allocation2 + $0x14] sm:$0xf]
    %v54 = vld [vmem:[#allocation2 + $0x18] sm:$0xf]
    %v55 = vld [vmem:[#allocation2 + $0x1c] sm:$0xf]
    %v56 = vld [vmem:[#allocation2 + $0x20] sm:$0xf]
    %v57 = vld [vmem:[#allocation2 + $0x24] sm:$0xf]
    %v58 = vld [vmem:[#allocation2 + $0x28] sm:$0xf]
    %v59 = vld [vmem:[#allocation2 + $0x2c] sm:$0xf]
    %v60 = vld [vmem:[#allocation2 + $0x30] sm:$0xf]
    %v61 = vld [vmem:[#allocation2 + $0x34] sm:$0xf]
    %v62 = vld [vmem:[#allocation2 + $0x38] sm:$0xf]
    %v63 = vld [vmem:[#allocation2 + $0x3c] sm:$0xf]
    %s64 = scalar_lea.vmem [#allocation2], 64
    %v65 = vld [vmem:[%s64] sm:$0xf]
    %v66 = vld [vmem:[%s64 + $0x4] sm:$0xf]
    %v67 = vld [vmem:[%s64 + $0x8] sm:$0xf]
    %v68 = vld [vmem:[%s64 + $0xc] sm:$0xf]
    %v69 = vld [vmem:[%s64 + $0x10] sm:$0xf]
    %v70 = vld [vmem:[%s64 + $0x14] sm:$0xf]
    %v71 = vld [vmem:[%s64 + $0x18] sm:$0xf]
    %v72 = vld [vmem:[%s64 + $0x1c] sm:$0xf]
    %v73 = vld [vmem:[%s64 + $0x20] sm:$0xf]
    %v74 = vld [vmem:[%s64 + $0x24] sm:$0xf]
    %v75 = vld [vmem:[%s64 + $0x28] sm:$0xf]
    %v76 = vld [vmem:[%s64 + $0x2c] sm:$0xf]
    %v77 = vld [vmem:[%s64 + $0x30] sm:$0xf]
    %v78 = vld [vmem:[%s64 + $0x34] sm:$0xf]
    %v79 = vld [vmem:[%s64 + $0x38] sm:$0xf]
    %v80 = vld [vmem:[%s64 + $0x3c] sm:$0xf]
    %s81 = scalar_lea.vmem [#allocation2], 128
    %v82 = vld [vmem:[%s81] sm:$0xf]
    %v83 = vld [vmem:[%s81 + $0x4] sm:$0xf]
    %v84 = vld [vmem:[%s81 + $0x8] sm:$0xf]
    %v85 = vld [vmem:[%s81 + $0xc] sm:$0xf]
    %v86 = vld [vmem:[%s81 + $0x10] sm:$0xf]
    %v87 = vld [vmem:[%s81 + $0x14] sm:$0xf]
    %v88 = vld [vmem:[%s81 + $0x18] sm:$0xf]
    %v89 = vld [vmem:[%s81 + $0x1c] sm:$0xf]
    %v90 = vld [vmem:[%s81 + $0x20] sm:$0xf]
    %v91 = vld [vmem:[%s81 + $0x24] sm:$0xf]
    %v92 = vld [vmem:[%s81 + $0x28] sm:$0xf]
    %v93 = vld [vmem:[%s81 + $0x2c] sm:$0xf]
    %v94 = vld [vmem:[%s81 + $0x30] sm:$0xf]
    %v95 = vld [vmem:[%s81 + $0x34] sm:$0xf]
    %v96 = vld [vmem:[%s81 + $0x38] sm:$0xf]
    %v97 = vld [vmem:[%s81 + $0x3c] sm:$0xf]
    %s98 = scalar_lea.vmem [#allocation2], 192
    %v99 = vld [vmem:[%s98] sm:$0xf]
    %v100 = vld [vmem:[%s98 + $0x4] sm:$0xf]
    %v101 = vld [vmem:[%s98 + $0x8] sm:$0xf]
    %v102 = vld [vmem:[%s98 + $0xc] sm:$0xf]
    %v103 = vld [vmem:[%s98 + $0x10] sm:$0xf]
    %v104 = vld [vmem:[%s98 + $0x14] sm:$0xf]
    %v105 = vld [vmem:[%s98 + $0x18] sm:$0xf]
    %v106 = vld [vmem:[%s98 + $0x1c] sm:$0xf]
    %v107 = vld [vmem:[%s98 + $0x20] sm:$0xf]
    %v108 = vld [vmem:[%s98 + $0x24] sm:$0xf]
    %v109 = vld [vmem:[%s98 + $0x28] sm:$0xf]
    %v110 = vld [vmem:[%s98 + $0x2c] sm:$0xf]
    %v111 = vld [vmem:[%s98 + $0x30] sm:$0xf]
    %v112 = vld [vmem:[%s98 + $0x34] sm:$0xf]
    %v113 = vld [vmem:[%s98 + $0x38] sm:$0xf]
    %v114 = vld [vmem:[%s98 + $0x3c] sm:$0xf]
    %v115 = vld [vmem:[%s3] sm:$0x1]
    %v116 = vld [vmem:[%s3 + $0x1] sm:$0x1]
    %v117 = vld [vmem:[%s3 + $0x2] sm:$0x1]
    %v118 = vld [vmem:[%s3 + $0x3] sm:$0x1]
    %v127 = vunpack.c.l.b16 %v40
    %v128 = vunpack.c.l.b16 %v41
    %v129 = vunpack.c.l.b16 %v42
    %v130 = vunpack.c.l.b16 %v43
    %v131 = vunpack.c.l.b16 %v44
    %v132 = vunpack.c.l.b16 %v45
    %v133 = vunpack.c.l.b16 %v46
    %v134 = vunpack.c.l.b16 %v47
    %v135 = vpack.c.b16 %v128, %v127
    %v136 = vpack.c.b16 %v130, %v129
    %v137 = vpack.c.b16 %v132, %v131
    %v138 = vpack.c.b16 %v134, %v133
    %v159 = vunpack.c.l.b16 %v48
    %v160 = vunpack.c.l.b16 %v49
    %v161 = vunpack.c.l.b16 %v50
    %v162 = vunpack.c.l.b16 %v51
    %v163 = vunpack.c.l.b16 %v52
    %v164 = vunpack.c.l.b16 %v53
    %v165 = vunpack.c.l.b16 %v54
    %v166 = vunpack.c.l.b16 %v55
    %v167 = vunpack.c.l.b16 %v56
    %v168 = vunpack.c.l.b16 %v57
    %v169 = vunpack.c.l.b16 %v58
    %v170 = vunpack.c.l.b16 %v59
    %v171 = vunpack.c.l.b16 %v60
    %v172 = vunpack.c.l.b16 %v61
    %v173 = vunpack.c.l.b16 %v62
    %v174 = vunpack.c.l.b16 %v63
    %v175 = vpack.c.b16 %v160, %v159
    %v176 = vpack.c.b16 %v162, %v161
    %v177 = vpack.c.b16 %v164, %v163
    %v178 = vpack.c.b16 %v166, %v165
    %v179 = vpack.c.b16 %v168, %v167
    %v180 = vpack.c.b16 %v170, %v169
    %v181 = vpack.c.b16 %v172, %v171
    %v182 = vpack.c.b16 %v174, %v173
    %191 = vmatprep.subr.bf16.mxu0 0
    %192 = vmatpush1.bf16.msra.mxu0 %v175
    %193 = vmatprep.subr.bf16.mxu0 0
    %194 = vmatpush1.bf16.msra.mxu0 %v176
    %195 = vmatprep.subr.bf16.mxu0 0
    %196 = vmatpush1.bf16.msra.mxu0 %v177
    %197 = vmatprep.subr.bf16.mxu0 0
    %198 = vmatpush1.bf16.msra.mxu0 %v178
    %199 = vmatprep.subr.bf16.mxu0 0
    %200 = vmatpush1.bf16.msra.mxu0 %v179
    %201 = vmatprep.subr.bf16.mxu0 0
    %202 = vmatpush1.bf16.msra.mxu0 %v180
    %203 = vmatprep.subr.bf16.mxu0 0
    %204 = vmatpush1.bf16.msra.mxu0 %v181
    %205 = vmatprep.subr.bf16.mxu0 0
    %206 = vmatpush1.bf16.msra.mxu0 %v182
    %207 = vmatprep.subr.bf16.mxu0 0
    %208 = vmatpush1.bf16.msra.mxu0 0
    %209 = vmatprep.subr.bf16.mxu0 0
    %210 = vmatpush1.bf16.msra.mxu0 0
    %211 = vmatprep.subr.bf16.mxu0 0
    %212 = vmatpush1.bf16.msra.mxu0 0
    %213 = vmatprep.subr.bf16.mxu0 0
    %214 = vmatpush1.bf16.msra.mxu0 0
    %215 = vmatprep.subr.bf16.mxu0 0
    %216 = vmatpush1.bf16.msra.mxu0 0
    %217 = vmatprep.subr.bf16.mxu0 0
    %218 = vmatpush1.bf16.msra.mxu0 0
    %219 = vmatprep.subr.bf16.mxu0 0
    %220 = vmatpush1.bf16.msra.mxu0 0
    %221 = vmatprep.subr.bf16.mxu0 0
    %222 = vmatpush1.bf16.msra.mxu0 0
    %223 = vmatprep.mubr.bf16.mxu0 0
    %224 = vmatmul.mubr.bf16.gmra.mrb[0].mxu0 %v135
    %v225 = vpop.f32.mrb[0].mxu0
    %v226 = vadd.f32 0.0, %v225
    %v227 = vpop.f32.mrb[0].mxu0
    %v228 = vpop.f32.mrb[0].mxu0
    %v229 = vadd.f32 0.0, %v228
    %v230 = vpop.f32.mrb[0].mxu0
    %231 = vmatprep.mubr.bf16.mxu0 0
    %232 = vmatmul.mubr.bf16.gmra.mrb[0].mxu0 %v136
    %v233 = vpop.f32.mrb[0].mxu0
    %v234 = vadd.f32 0.0, %v233
    %v235 = vpop.f32.mrb[0].mxu0
    %v236 = vpop.f32.mrb[0].mxu0
    %v237 = vadd.f32 0.0, %v236
    %v238 = vpop.f32.mrb[0].mxu0
    %239 = vmatprep.mubr.bf16.mxu0 0
    %240 = vmatmul.mubr.bf16.gmra.mrb[0].mxu0 %v137
    %v241 = vpop.f32.mrb[0].mxu0
    %v242 = vadd.f32 0.0, %v241
    %v243 = vpop.f32.mrb[0].mxu0
    %v244 = vpop.f32.mrb[0].mxu0
    %v245 = vadd.f32 0.0, %v244
    %v246 = vpop.f32.mrb[0].mxu0
    %247 = vmatprep.mubr.bf16.mxu0 0
    %248 = vmatmul.mubr.bf16.gmra.mrb[0].mxu0 %v138
    %v249 = vpop.f32.mrb[0].mxu0
    %v250 = vadd.f32 0.0, %v249
    %v251 = vpop.f32.mrb[0].mxu0
    %v252 = vpop.f32.mrb[0].mxu0
    %v253 = vadd.f32 0.0, %v252
    %v254 = vpop.f32.mrb[0].mxu0
    %255 = vdwg.mxu0
    %v256 = vpack.c.bf16 %v229, %v226
    %v257 = vpack.c.bf16 %v237, %v234
    %v258 = vpack.c.bf16 %v245, %v242
    %v259 = vpack.c.bf16 %v253, %v250
    %v260 = vlaneseq
    %v261 = vshrl.u32 %v260, 7
    %v262 = vsub.s32 0, %v261
    %v263 = vrot.slane %v115, %v262
    %v272 = vunpack.c.l.b16 %v32
    %v273 = vunpack.c.l.b16 %v33
    %v274 = vunpack.c.l.b16 %v34
    %v275 = vunpack.c.l.b16 %v35
    %v276 = vunpack.c.l.b16 %v36
    %v277 = vunpack.c.l.b16 %v37
    %v278 = vunpack.c.l.b16 %v38
    %v279 = vunpack.c.l.b16 %v39
    %v280 = vpack.c.b16 %v273, %v272
    %v281 = vpack.c.b16 %v275, %v274
    %v282 = vpack.c.b16 %v277, %v276
    %v283 = vpack.c.b16 %v279, %v278
    %vm284 = vcmask 523264
    %v286 = vsel %vm284, %v280, 0
    %v289 = vsel %vm284, %v281, 0
    %v292 = vsel %vm284, %v282, 0
    %v295 = vsel %vm284, %v283, 0
    %297 = vmatprep.subr.bf16.mxu0 0
    %298 = vmatpush1.bf16.msra.mxu0 %v256
    %299 = vmatprep.subr.bf16.mxu0 0
    %300 = vmatpush1.bf16.msra.mxu0 %v257
    %301 = vmatprep.subr.bf16.mxu0 0
    %302 = vmatpush1.bf16.msra.mxu0 %v258
    %303 = vmatprep.subr.bf16.mxu0 0
    %304 = vmatpush1.bf16.msra.mxu0 %v259
    %305 = vmatprep.subr.bf16.mxu0 0
    %306 = vmatpush1.bf16.msra.mxu0 0
    %307 = vmatprep.subr.bf16.mxu0 0
    %308 = vmatpush1.bf16.msra.mxu0 0
    %309 = vmatprep.subr.bf16.mxu0 0
    %310 = vmatpush1.bf16.msra.mxu0 0
    %311 = vmatprep.subr.bf16.mxu0 0
    %312 = vmatpush1.bf16.msra.mxu0 0
    %313 = vmatprep.subr.bf16.mxu0 0
    %314 = vmatpush1.bf16.msra.mxu0 0
    %315 = vmatprep.subr.bf16.mxu0 0
    %316 = vmatpush1.bf16.msra.mxu0 0
    %317 = vmatprep.subr.bf16.mxu0 0
    %318 = vmatpush1.bf16.msra.mxu0 0
    %319 = vmatprep.subr.bf16.mxu0 0
    %320 = vmatpush1.bf16.msra.mxu0 0
    %321 = vmatprep.subr.bf16.mxu0 0
    %322 = vmatpush1.bf16.msra.mxu0 0
    %323 = vmatprep.subr.bf16.mxu0 0
    %324 = vmatpush1.bf16.msra.mxu0 0
    %325 = vmatprep.subr.bf16.mxu0 0
    %326 = vmatpush1.bf16.msra.mxu0 0
    %327 = vmatprep.subr.bf16.mxu0 0
    %328 = vmatpush1.bf16.msra.mxu0 0
    %329 = vmatprep.mubr.bf16.mxu0 0
    %330 = vmatmul.mubr.bf16.gmra.mrb[0].mxu0 %v286
    %v331 = vpop.f32.mrb[0].mxu0
    %v332 = vadd.f32 %v263, %v331
    %v333 = vpop.f32.mrb[0].mxu0
    %v334 = vpop.f32.mrb[0].mxu0
    %v335 = vadd.f32 %v263, %v334
    %v336 = vpop.f32.mrb[0].mxu0
    %337 = vmatprep.mubr.bf16.mxu0 0
    %338 = vmatmul.mubr.bf16.gmra.mrb[0].mxu0 %v289
    %v339 = vpop.f32.mrb[0].mxu0
    %v340 = vadd.f32 %v263, %v339
    %v341 = vpop.f32.mrb[0].mxu0
    %v342 = vpop.f32.mrb[0].mxu0
    %v343 = vadd.f32 %v263, %v342
    %v344 = vpop.f32.mrb[0].mxu0
    %345 = vmatprep.mubr.bf16.mxu0 0
    %346 = vmatmul.mubr.bf16.gmra.mrb[0].mxu0 %v292
    %v347 = vpop.f32.mrb[0].mxu0
    %v348 = vadd.f32 %v263, %v347
    %v349 = vpop.f32.mrb[0].mxu0
    %v350 = vpop.f32.mrb[0].mxu0
    %v351 = vadd.f32 %v263, %v350
    %v352 = vpop.f32.mrb[0].mxu0
    %353 = vmatprep.mubr.bf16.mxu0 0
    %354 = vmatmul.mubr.bf16.gmra.mrb[0].mxu0 %v295
    %v355 = vpop.f32.mrb[0].mxu0
    %v356 = vadd.f32 %v263, %v355
    %v357 = vpop.f32.mrb[0].mxu0
    %v358 = vpop.f32.mrb[0].mxu0
    %v359 = vadd.f32 %v263, %v358
    %v360 = vpop.f32.mrb[0].mxu0
    %361 = vdwg.mxu0
    %v362 = vtanh.pop %v332
    %v363 = vtanh.pop %v335
    %v364 = vtanh.pop %v340
    %v365 = vtanh.pop %v343
    %v366 = vtanh.pop %v348
    %v367 = vtanh.pop %v351
    %v368 = vtanh.pop %v356
    %v369 = vtanh.pop %v359
    %v370 = vpack.c.bf16 %v363, %v362
    %v371 = vpack.c.bf16 %v365, %v364
    %v372 = vpack.c.bf16 %v367, %v366
    %v373 = vpack.c.bf16 %v369, %v368
    %v390 = vunpack.c.l.b16 %v65
    %v391 = vunpack.c.l.b16 %v66
    %v392 = vunpack.c.l.b16 %v67
    %v393 = vunpack.c.l.b16 %v68
    %v394 = vunpack.c.l.b16 %v69
    %v395 = vunpack.c.l.b16 %v70
    %v396 = vunpack.c.l.b16 %v71
    %v397 = vunpack.c.l.b16 %v72
    %v398 = vunpack.c.l.b16 %v73
    %v399 = vunpack.c.l.b16 %v74
    %v400 = vunpack.c.l.b16 %v75
    %v401 = vunpack.c.l.b16 %v76
    %v402 = vunpack.c.l.b16 %v77
    %v403 = vunpack.c.l.b16 %v78
    %v404 = vunpack.c.l.b16 %v79
    %v405 = vunpack.c.l.b16 %v80
    %v406 = vpack.c.b16 %v391, %v390
    %v407 = vpack.c.b16 %v393, %v392
    %v408 = vpack.c.b16 %v395, %v394
    %v409 = vpack.c.b16 %v397, %v396
    %v410 = vpack.c.b16 %v399, %v398
    %v411 = vpack.c.b16 %v401, %v400
    %v412 = vpack.c.b16 %v403, %v402
    %v413 = vpack.c.b16 %v405, %v404
    %422 = vmatprep.subr.bf16.mxu0 0
    %423 = vmatpush1.bf16.msra.mxu0 %v406
    %424 = vmatprep.subr.bf16.mxu0 0
    %425 = vmatpush1.bf16.msra.mxu0 %v407
    %426 = vmatprep.subr.bf16.mxu0 0
    %427 = vmatpush1.bf16.msra.mxu0 %v408
    %428 = vmatprep.subr.bf16.mxu0 0
    %429 = vmatpush1.bf16.msra.mxu0 %v409
    %430 = vmatprep.subr.bf16.mxu0 0
    %431 = vmatpush1.bf16.msra.mxu0 %v410
    %432 = vmatprep.subr.bf16.mxu0 0
    %433 = vmatpush1.bf16.msra.mxu0 %v411
    %434 = vmatprep.subr.bf16.mxu0 0
    %435 = vmatpush1.bf16.msra.mxu0 %v412
    %436 = vmatprep.subr.bf16.mxu0 0
    %437 = vmatpush1.bf16.msra.mxu0 %v413
    %438 = vmatprep.subr.bf16.mxu0 0
    %439 = vmatpush1.bf16.msra.mxu0 0
    %440 = vmatprep.subr.bf16.mxu0 0
    %441 = vmatpush1.bf16.msra.mxu0 0
    %442 = vmatprep.subr.bf16.mxu0 0
    %443 = vmatpush1.bf16.msra.mxu0 0
    %444 = vmatprep.subr.bf16.mxu0 0
    %445 = vmatpush1.bf16.msra.mxu0 0
    %446 = vmatprep.subr.bf16.mxu0 0
    %447 = vmatpush1.bf16.msra.mxu0 0
    %448 = vmatprep.subr.bf16.mxu0 0
    %449 = vmatpush1.bf16.msra.mxu0 0
    %450 = vmatprep.subr.bf16.mxu0 0
    %451 = vmatpush1.bf16.msra.mxu0 0
    %452 = vmatprep.subr.bf16.mxu0 0
    %453 = vmatpush1.bf16.msra.mxu0 0
    %454 = vmatprep.mubr.bf16.mxu0 0
    %455 = vmatmul.mubr.bf16.gmra.mrb[0].mxu0 %v370
    %v456 = vpop.f32.mrb[0].mxu0
    %v457 = vadd.f32 0.0, %v456
    %v458 = vpop.f32.mrb[0].mxu0
    %v459 = vpop.f32.mrb[0].mxu0
    %v460 = vadd.f32 0.0, %v459
    %v461 = vpop.f32.mrb[0].mxu0
    %462 = vmatprep.mubr.bf16.mxu0 0
    %463 = vmatmul.mubr.bf16.gmra.mrb[0].mxu0 %v371
    %v464 = vpop.f32.mrb[0].mxu0
    %v465 = vadd.f32 0.0, %v464
    %v466 = vpop.f32.mrb[0].mxu0
    %v467 = vpop.f32.mrb[0].mxu0
    %v468 = vadd.f32 0.0, %v467
    %v469 = vpop.f32.mrb[0].mxu0
    %470 = vmatprep.mubr.bf16.mxu0 0
    %471 = vmatmul.mubr.bf16.gmra.mrb[0].mxu0 %v372
    %v472 = vpop.f32.mrb[0].mxu0
    %v473 = vadd.f32 0.0, %v472
    %v474 = vpop.f32.mrb[0].mxu0
    %v475 = vpop.f32.mrb[0].mxu0
    %v476 = vadd.f32 0.0, %v475
    %v477 = vpop.f32.mrb[0].mxu0
    %478 = vmatprep.mubr.bf16.mxu0 0
    %479 = vmatmul.mubr.bf16.gmra.mrb[0].mxu0 %v373
    %v480 = vpop.f32.mrb[0].mxu0
    %v481 = vadd.f32 0.0, %v480
    %v482 = vpop.f32.mrb[0].mxu0
    %v483 = vpop.f32.mrb[0].mxu0
    %v484 = vadd.f32 0.0, %v483
    %v485 = vpop.f32.mrb[0].mxu0
    %486 = vdwg.mxu0
    %v487 = vpack.c.bf16 %v460, %v457
    %v488 = vpack.c.bf16 %v468, %v465
    %v489 = vpack.c.bf16 %v476, %v473
    %v490 = vpack.c.bf16 %v484, %v481
    %v491 = vlaneseq
    %v492 = vshrl.u32 %v491, 7
    %v493 = vsub.s32 0, %v492
    %v494 = vrot.slane %v116, %v493
    %495 = vmatprep.subr.bf16.mxu0 0
    %496 = vmatpush1.bf16.msra.mxu0 %v487
    %497 = vmatprep.subr.bf16.mxu0 0
    %498 = vmatpush1.bf16.msra.mxu0 %v488
    %499 = vmatprep.subr.bf16.mxu0 0
    %500 = vmatpush1.bf16.msra.mxu0 %v489
    %501 = vmatprep.subr.bf16.mxu0 0
    %502 = vmatpush1.bf16.msra.mxu0 %v490
    %503 = vmatprep.subr.bf16.mxu0 0
    %504 = vmatpush1.bf16.msra.mxu0 0
    %505 = vmatprep.subr.bf16.mxu0 0
    %506 = vmatpush1.bf16.msra.mxu0 0
    %507 = vmatprep.subr.bf16.mxu0 0
    %508 = vmatpush1.bf16.msra.mxu0 0
    %509 = vmatprep.subr.bf16.mxu0 0
    %510 = vmatpush1.bf16.msra.mxu0 0
    %511 = vmatprep.subr.bf16.mxu0 0
    %512 = vmatpush1.bf16.msra.mxu0 0
    %513 = vmatprep.subr.bf16.mxu0 0
    %514 = vmatpush1.bf16.msra.mxu0 0
    %515 = vmatprep.subr.bf16.mxu0 0
    %516 = vmatpush1.bf16.msra.mxu0 0
    %517 = vmatprep.subr.bf16.mxu0 0
    %518 = vmatpush1.bf16.msra.mxu0 0
    %519 = vmatprep.subr.bf16.mxu0 0
    %520 = vmatpush1.bf16.msra.mxu0 0
    %521 = vmatprep.subr.bf16.mxu0 0
    %522 = vmatpush1.bf16.msra.mxu0 0
    %523 = vmatprep.subr.bf16.mxu0 0
    %524 = vmatpush1.bf16.msra.mxu0 0
    %525 = vmatprep.subr.bf16.mxu0 0
    %526 = vmatpush1.bf16.msra.mxu0 0
    %527 = vmatprep.mubr.bf16.mxu0 0
    %528 = vmatmul.mubr.bf16.gmra.mrb[0].mxu0 %v286
    %v529 = vpop.f32.mrb[0].mxu0
    %v530 = vadd.f32 %v494, %v529
    %v531 = vpop.f32.mrb[0].mxu0
    %v532 = vpop.f32.mrb[0].mxu0
    %v533 = vadd.f32 %v494, %v532
    %v534 = vpop.f32.mrb[0].mxu0
    %535 = vmatprep.mubr.bf16.mxu0 0
    %536 = vmatmul.mubr.bf16.gmra.mrb[0].mxu0 %v289
    %v537 = vpop.f32.mrb[0].mxu0
    %v538 = vadd.f32 %v494, %v537
    %v539 = vpop.f32.mrb[0].mxu0
    %v540 = vpop.f32.mrb[0].mxu0
    %v541 = vadd.f32 %v494, %v540
    %v542 = vpop.f32.mrb[0].mxu0
    %543 = vmatprep.mubr.bf16.mxu0 0
    %544 = vmatmul.mubr.bf16.gmra.mrb[0].mxu0 %v292
    %v545 = vpop.f32.mrb[0].mxu0
    %v546 = vadd.f32 %v494, %v545
    %v547 = vpop.f32.mrb[0].mxu0
    %v548 = vpop.f32.mrb[0].mxu0
    %v549 = vadd.f32 %v494, %v548
    %v550 = vpop.f32.mrb[0].mxu0
    %551 = vmatprep.mubr.bf16.mxu0 0
    %552 = vmatmul.mubr.bf16.gmra.mrb[0].mxu0 %v295
    %v553 = vpop.f32.mrb[0].mxu0
    %v554 = vadd.f32 %v494, %v553
    %v555 = vpop.f32.mrb[0].mxu0
    %v556 = vpop.f32.mrb[0].mxu0
    %v557 = vadd.f32 %v494, %v556
    %v558 = vpop.f32.mrb[0].mxu0
    %559 = vdwg.mxu0
    %v560 = vtanh.pop %v530
    %v561 = vtanh.pop %v533
    %v562 = vtanh.pop %v538
    %v563 = vtanh.pop %v541
    %v564 = vtanh.pop %v546
    %v565 = vtanh.pop %v549
    %v566 = vtanh.pop %v554
    %v567 = vtanh.pop %v557
    %v568 = vpack.c.bf16 %v561, %v560
    %v569 = vpack.c.bf16 %v563, %v562
    %v570 = vpack.c.bf16 %v565, %v564
    %v571 = vpack.c.bf16 %v567, %v566
    %v588 = vunpack.c.l.b16 %v82
    %v589 = vunpack.c.l.b16 %v83
    %v590 = vunpack.c.l.b16 %v84
    %v591 = vunpack.c.l.b16 %v85
    %v592 = vunpack.c.l.b16 %v86
    %v593 = vunpack.c.l.b16 %v87
    %v594 = vunpack.c.l.b16 %v88
    %v595 = vunpack.c.l.b16 %v89
    %v596 = vunpack.c.l.b16 %v90
    %v597 = vunpack.c.l.b16 %v91
    %v598 = vunpack.c.l.b16 %v92
    %v599 = vunpack.c.l.b16 %v93
    %v600 = vunpack.c.l.b16 %v94
    %v601 = vunpack.c.l.b16 %v95
    %v602 = vunpack.c.l.b16 %v96
    %v603 = vunpack.c.l.b16 %v97
    %v604 = vpack.c.b16 %v589, %v588
    %v605 = vpack.c.b16 %v591, %v590
    %v606 = vpack.c.b16 %v593, %v592
    %v607 = vpack.c.b16 %v595, %v594
    %v608 = vpack.c.b16 %v597, %v596
    %v609 = vpack.c.b16 %v599, %v598
    %v610 = vpack.c.b16 %v601, %v600
    %v611 = vpack.c.b16 %v603, %v602
    %620 = vmatprep.subr.bf16.mxu0 0
    %621 = vmatpush1.bf16.msra.mxu0 %v604
    %622 = vmatprep.subr.bf16.mxu0 0
    %623 = vmatpush1.bf16.msra.mxu0 %v605
    %624 = vmatprep.subr.bf16.mxu0 0
    %625 = vmatpush1.bf16.msra.mxu0 %v606
    %626 = vmatprep.subr.bf16.mxu0 0
    %627 = vmatpush1.bf16.msra.mxu0 %v607
    %628 = vmatprep.subr.bf16.mxu0 0
    %629 = vmatpush1.bf16.msra.mxu0 %v608
    %630 = vmatprep.subr.bf16.mxu0 0
    %631 = vmatpush1.bf16.msra.mxu0 %v609
    %632 = vmatprep.subr.bf16.mxu0 0
    %633 = vmatpush1.bf16.msra.mxu0 %v610
    %634 = vmatprep.subr.bf16.mxu0 0
    %635 = vmatpush1.bf16.msra.mxu0 %v611
    %636 = vmatprep.subr.bf16.mxu0 0
    %637 = vmatpush1.bf16.msra.mxu0 0
    %638 = vmatprep.subr.bf16.mxu0 0
    %639 = vmatpush1.bf16.msra.mxu0 0
    %640 = vmatprep.subr.bf16.mxu0 0
    %641 = vmatpush1.bf16.msra.mxu0 0
    %642 = vmatprep.subr.bf16.mxu0 0
    %643 = vmatpush1.bf16.msra.mxu0 0
    %644 = vmatprep.subr.bf16.mxu0 0
    %645 = vmatpush1.bf16.msra.mxu0 0
    %646 = vmatprep.subr.bf16.mxu0 0
    %647 = vmatpush1.bf16.msra.mxu0 0
    %648 = vmatprep.subr.bf16.mxu0 0
    %649 = vmatpush1.bf16.msra.mxu0 0
    %650 = vmatprep.subr.bf16.mxu0 0
    %651 = vmatpush1.bf16.msra.mxu0 0
    %652 = vmatprep.mubr.bf16.mxu0 0
    %653 = vmatmul.mubr.bf16.gmra.mrb[0].mxu0 %v568
    %v654 = vpop.f32.mrb[0].mxu0
    %v655 = vadd.f32 0.0, %v654
    %v656 = vpop.f32.mrb[0].mxu0
    %v657 = vpop.f32.mrb[0].mxu0
    %v658 = vadd.f32 0.0, %v657
    %v659 = vpop.f32.mrb[0].mxu0
    %660 = vmatprep.mubr.bf16.mxu0 0
    %661 = vmatmul.mubr.bf16.gmra.mrb[0].mxu0 %v569
    %v662 = vpop.f32.mrb[0].mxu0
    %v663 = vadd.f32 0.0, %v662
    %v664 = vpop.f32.mrb[0].mxu0
    %v665 = vpop.f32.mrb[0].mxu0
    %v666 = vadd.f32 0.0, %v665
    %v667 = vpop.f32.mrb[0].mxu0
    %668 = vmatprep.mubr.bf16.mxu0 0
    %669 = vmatmul.mubr.bf16.gmra.mrb[0].mxu0 %v570
    %v670 = vpop.f32.mrb[0].mxu0
    %v671 = vadd.f32 0.0, %v670
    %v672 = vpop.f32.mrb[0].mxu0
    %v673 = vpop.f32.mrb[0].mxu0
    %v674 = vadd.f32 0.0, %v673
    %v675 = vpop.f32.mrb[0].mxu0
    %676 = vmatprep.mubr.bf16.mxu0 0
    %677 = vmatmul.mubr.bf16.gmra.mrb[0].mxu0 %v571
    %v678 = vpop.f32.mrb[0].mxu0
    %v679 = vadd.f32 0.0, %v678
    %v680 = vpop.f32.mrb[0].mxu0
    %v681 = vpop.f32.mrb[0].mxu0
    %v682 = vadd.f32 0.0, %v681
    %v683 = vpop.f32.mrb[0].mxu0
    %684 = vdwg.mxu0
    %v685 = vpack.c.bf16 %v658, %v655
    %v686 = vpack.c.bf16 %v666, %v663
    %v687 = vpack.c.bf16 %v674, %v671
    %v688 = vpack.c.bf16 %v682, %v679
    %v689 = vlaneseq
    %v690 = vshrl.u32 %v689, 7
    %v691 = vsub.s32 0, %v690
    %v692 = vrot.slane %v117, %v691
    %693 = vmatprep.subr.bf16.mxu0 0
    %694 = vmatpush1.bf16.msra.mxu0 %v685
    %695 = vmatprep.subr.bf16.mxu0 0
    %696 = vmatpush1.bf16.msra.mxu0 %v686
    %697 = vmatprep.subr.bf16.mxu0 0
    %698 = vmatpush1.bf16.msra.mxu0 %v687
    %699 = vmatprep.subr.bf16.mxu0 0
    %700 = vmatpush1.bf16.msra.mxu0 %v688
    %701 = vmatprep.subr.bf16.mxu0 0
    %702 = vmatpush1.bf16.msra.mxu0 0
    %703 = vmatprep.subr.bf16.mxu0 0
    %704 = vmatpush1.bf16.msra.mxu0 0
    %705 = vmatprep.subr.bf16.mxu0 0
    %706 = vmatpush1.bf16.msra.mxu0 0
    %707 = vmatprep.subr.bf16.mxu0 0
    %708 = vmatpush1.bf16.msra.mxu0 0
    %709 = vmatprep.subr.bf16.mxu0 0
    %710 = vmatpush1.bf16.msra.mxu0 0
    %711 = vmatprep.subr.bf16.mxu0 0
    %712 = vmatpush1.bf16.msra.mxu0 0
    %713 = vmatprep.subr.bf16.mxu0 0
    %714 = vmatpush1.bf16.msra.mxu0 0
    %715 = vmatprep.subr.bf16.mxu0 0
    %716 = vmatpush1.bf16.msra.mxu0 0
    %717 = vmatprep.subr.bf16.mxu0 0
    %718 = vmatpush1.bf16.msra.mxu0 0
    %719 = vmatprep.subr.bf16.mxu0 0
    %720 = vmatpush1.bf16.msra.mxu0 0
    %721 = vmatprep.subr.bf16.mxu0 0
    %722 = vmatpush1.bf16.msra.mxu0 0
    %723 = vmatprep.subr.bf16.mxu0 0
    %724 = vmatpush1.bf16.msra.mxu0 0
    %725 = vmatprep.mubr.bf16.mxu0 0
    %726 = vmatmul.mubr.bf16.gmra.mrb[0].mxu0 %v286
    %v727 = vpop.f32.mrb[0].mxu0
    %v728 = vadd.f32 %v692, %v727
    %v729 = vpop.f32.mrb[0].mxu0
    %v730 = vpop.f32.mrb[0].mxu0
    %v731 = vadd.f32 %v692, %v730
    %v732 = vpop.f32.mrb[0].mxu0
    %733 = vmatprep.mubr.bf16.mxu0 0
    %734 = vmatmul.mubr.bf16.gmra.mrb[0].mxu0 %v289
    %v735 = vpop.f32.mrb[0].mxu0
    %v736 = vadd.f32 %v692, %v735
    %v737 = vpop.f32.mrb[0].mxu0
    %v738 = vpop.f32.mrb[0].mxu0
    %v739 = vadd.f32 %v692, %v738
    %v740 = vpop.f32.mrb[0].mxu0
    %741 = vmatprep.mubr.bf16.mxu0 0
    %742 = vmatmul.mubr.bf16.gmra.mrb[0].mxu0 %v292
    %v743 = vpop.f32.mrb[0].mxu0
    %v744 = vadd.f32 %v692, %v743
    %v745 = vpop.f32.mrb[0].mxu0
    %v746 = vpop.f32.mrb[0].mxu0
    %v747 = vadd.f32 %v692, %v746
    %v748 = vpop.f32.mrb[0].mxu0
    %749 = vmatprep.mubr.bf16.mxu0 0
    %750 = vmatmul.mubr.bf16.gmra.mrb[0].mxu0 %v295
    %v751 = vpop.f32.mrb[0].mxu0
    %v752 = vadd.f32 %v692, %v751
    %v753 = vpop.f32.mrb[0].mxu0
    %v754 = vpop.f32.mrb[0].mxu0
    %v755 = vadd.f32 %v692, %v754
    %v756 = vpop.f32.mrb[0].mxu0
    %757 = vdwg.mxu0
    %v758 = vtanh.pop %v728
    %v759 = vtanh.pop %v731
    %v760 = vtanh.pop %v736
    %v761 = vtanh.pop %v739
    %v762 = vtanh.pop %v744
    %v763 = vtanh.pop %v747
    %v764 = vtanh.pop %v752
    %v765 = vtanh.pop %v755
    %v766 = vpack.c.bf16 %v759, %v758
    %v767 = vpack.c.bf16 %v761, %v760
    %v768 = vpack.c.bf16 %v763, %v762
    %v769 = vpack.c.bf16 %v765, %v764
    %v770 = vlaneseq
    %v771 = vshrl.u32 %v770, 7
    %v772 = vsub.s32 0, %v771
    %v773 = vrot.slane %v118, %v772
    %v790 = vunpack.c.l.b16 %v99
    %v791 = vunpack.c.l.b16 %v100
    %v792 = vunpack.c.l.b16 %v101
    %v793 = vunpack.c.l.b16 %v102
    %v794 = vunpack.c.l.b16 %v103
    %v795 = vunpack.c.l.b16 %v104
    %v796 = vunpack.c.l.b16 %v105
    %v797 = vunpack.c.l.b16 %v106
    %v798 = vunpack.c.l.b16 %v107
    %v799 = vunpack.c.l.b16 %v108
    %v800 = vunpack.c.l.b16 %v109
    %v801 = vunpack.c.l.b16 %v110
    %v802 = vunpack.c.l.b16 %v111
    %v803 = vunpack.c.l.b16 %v112
    %v804 = vunpack.c.l.b16 %v113
    %v805 = vunpack.c.l.b16 %v114
    %v806 = vpack.c.b16 %v791, %v790
    %v807 = vpack.c.b16 %v793, %v792
    %v808 = vpack.c.b16 %v795, %v794
    %v809 = vpack.c.b16 %v797, %v796
    %v810 = vpack.c.b16 %v799, %v798
    %v811 = vpack.c.b16 %v801, %v800
    %v812 = vpack.c.b16 %v803, %v802
    %v813 = vpack.c.b16 %v805, %v804
    %822 = vmatprep.subr.bf16.mxu0 0
    %823 = vmatpush1.bf16.msra.mxu0 %v806
    %824 = vmatprep.subr.bf16.mxu0 0
    %825 = vmatpush1.bf16.msra.mxu0 %v807
    %826 = vmatprep.subr.bf16.mxu0 0
    %827 = vmatpush1.bf16.msra.mxu0 %v808
    %828 = vmatprep.subr.bf16.mxu0 0
    %829 = vmatpush1.bf16.msra.mxu0 %v809
    %830 = vmatprep.subr.bf16.mxu0 0
    %831 = vmatpush1.bf16.msra.mxu0 %v810
    %832 = vmatprep.subr.bf16.mxu0 0
    %833 = vmatpush1.bf16.msra.mxu0 %v811
    %834 = vmatprep.subr.bf16.mxu0 0
    %835 = vmatpush1.bf16.msra.mxu0 %v812
    %836 = vmatprep.subr.bf16.mxu0 0
    %837 = vmatpush1.bf16.msra.mxu0 %v813
    %838 = vmatprep.subr.bf16.mxu0 0
    %839 = vmatpush1.bf16.msra.mxu0 0
    %840 = vmatprep.subr.bf16.mxu0 0
    %841 = vmatpush1.bf16.msra.mxu0 0
    %842 = vmatprep.subr.bf16.mxu0 0
    %843 = vmatpush1.bf16.msra.mxu0 0
    %844 = vmatprep.subr.bf16.mxu0 0
    %845 = vmatpush1.bf16.msra.mxu0 0
    %846 = vmatprep.subr.bf16.mxu0 0
    %847 = vmatpush1.bf16.msra.mxu0 0
    %848 = vmatprep.subr.bf16.mxu0 0
    %849 = vmatpush1.bf16.msra.mxu0 0
    %850 = vmatprep.subr.bf16.mxu0 0
    %851 = vmatpush1.bf16.msra.mxu0 0
    %852 = vmatprep.subr.bf16.mxu0 0
    %853 = vmatpush1.bf16.msra.mxu0 0
    %854 = vmatprep.mubr.bf16.mxu0 0
    %855 = vmatmul.mubr.bf16.gmra.mrb[0].mxu0 %v766
    %v856 = vpop.f32.mrb[0].mxu0
    %v857 = vadd.f32 %v773, %v856
    %v858 = vpop.f32.mrb[0].mxu0
    %v859 = vpop.f32.mrb[0].mxu0
    %v860 = vadd.f32 %v773, %v859
    %v861 = vpop.f32.mrb[0].mxu0
    %862 = vmatprep.mubr.bf16.mxu0 0
    %863 = vmatmul.mubr.bf16.gmra.mrb[0].mxu0 %v767
    %v864 = vpop.f32.mrb[0].mxu0
    %v865 = vadd.f32 %v773, %v864
    %v866 = vpop.f32.mrb[0].mxu0
    %v867 = vpop.f32.mrb[0].mxu0
    %v868 = vadd.f32 %v773, %v867
    %v869 = vpop.f32.mrb[0].mxu0
    %870 = vmatprep.mubr.bf16.mxu0 0
    %871 = vmatmul.mubr.bf16.gmra.mrb[0].mxu0 %v768
    %v872 = vpop.f32.mrb[0].mxu0
    %v873 = vadd.f32 %v773, %v872
    %v874 = vpop.f32.mrb[0].mxu0
    %v875 = vpop.f32.mrb[0].mxu0
    %v876 = vadd.f32 %v773, %v875
    %v877 = vpop.f32.mrb[0].mxu0
    %878 = vmatprep.mubr.bf16.mxu0 0
    %879 = vmatmul.mubr.bf16.gmra.mrb[0].mxu0 %v769
    %v880 = vpop.f32.mrb[0].mxu0
    %v881 = vadd.f32 %v773, %v880
    %v882 = vpop.f32.mrb[0].mxu0
    %v883 = vpop.f32.mrb[0].mxu0
    %v884 = vadd.f32 %v773, %v883
    %v885 = vpop.f32.mrb[0].mxu0
    %886 = vdwg.mxu0
    %887 = vst [vmem:[%s4] sm:$0xff] %v857
    %888 = vst [vmem:[%s4 + $0x8] sm:$0xff] %v860
    %889 = vst [vmem:[%s4 + $0x10] sm:$0xff] %v865
    %890 = vst [vmem:[%s4 + $0x18] sm:$0xff] %v868
    %891 = vst [vmem:[%s4 + $0x20] sm:$0xff] %v873
    %892 = vst [vmem:[%s4 + $0x28] sm:$0xff] %v876
    %893 = vst [vmem:[%s4 + $0x30] sm:$0xff] %v881
    %894 = vst [vmem:[%s4 + $0x38] sm:$0xff] %v884
    %s895 = scalar_lea.vmem %s4, 64
    %896 = vst [vmem:[%s895] sm:$0xff] %v758
    %897 = vst [vmem:[%s895 + $0x8] sm:$0xff] %v759
    %898 = vst [vmem:[%s895 + $0x10] sm:$0xff] %v760
    %899 = vst [vmem:[%s895 + $0x18] sm:$0xff] %v761
    %900 = vst [vmem:[%s895 + $0x20] sm:$0xff] %v762
    %901 = vst [vmem:[%s895 + $0x28] sm:$0xff] %v763
    %902 = vst [vmem:[%s895 + $0x30] sm:$0xff] %v764
    %903 = vst [vmem:[%s895 + $0x38] sm:$0xff] %v765
    // Predicated region
    $region22: #{gcn_forward.1} parent=1 // pred_check
      _
    $region23: #{gcn_forward.1} parent=1 // pred_check_branch
      %905 = sbr.rel (0) target = $region25
    $region24: #{gcn_forward.1} parent=1 // pred_region
      _
    $region25: #{gcn_forward.1} parent=1 // pred_fallthru
      _
    // Predicated region
    $region26: #{gcn_forward.1} parent=1 // pred_check
      _
    $region27: #{gcn_forward.1} parent=1 // pred_check_branch
      %907 = sbr.rel (0) target = $region29
    $region28: #{gcn_forward.1} parent=1 // pred_region
      _
    $region29: #{gcn_forward.1} parent=1 // pred_fallthru
      _
    %908 = vsyncpa [#allocation3], 1

</llo_original>
